<compile_context>
chip_gen: v7x
topology: tpu7x:2x2x1
jax: 0.10.0
libtpu: 0.0.40
codegen_flags: <defaults>
</compile_context>

<pallas_src>
import math

import jax
import jax.numpy as jnp
from jax.experimental import pallas as pl
from jax.experimental.pallas import tpu as pltpu


def _round_up(x, m):
    return ((x + m - 1) // m) * m


def _mgru_kernel(xh_ref, h_ref, w_z_ref, w_n_ref, b_z_ref, b_n_ref, out_ref):
    """One batch tile of the minimal-GRU cell.

    xh_ref : (TB, I+H)   concatenated [x | h] (possibly bf16)
    h_ref  : (TB, Hp)    hidden state for the convex blend (f32/x dtype)
    w_z/w_n: (I+H, Hp)   fused per-gate weights [W_ih_g^T ; W_hh_g^T]
    b_z/b_n: (1, Hp)     per-gate bias rows
    out_ref: (TB, Hp)
    """
    xh = xh_ref[...]

    # One MXU call per gate, f32 accumulation; results are lane-dense (Hp % 128 == 0).
    z = jax.nn.sigmoid(
        jnp.dot(xh, w_z_ref[...], preferred_element_type=jnp.float32) + b_z_ref[...]
    )
    n = jnp.maximum(
        jnp.dot(xh, w_n_ref[...], preferred_element_type=jnp.float32) + b_n_ref[...],
        0.0,
    )

    h = h_ref[...].astype(jnp.float32)
    out_ref[...] = ((1.0 - z) * n + z * h).astype(out_ref.dtype)


def mgru_cell(x, h, weight_ih, weight_hh, bias=None, *,
              block_b=256, use_bf16_matmul=False):
    """Minimal-GRU cell forward.

    x        : (B, I)
    h        : (B, H)
    weight_ih: (2H, I)   PyTorch [out, in] convention
    weight_hh: (2H, H)
    bias     : (2H,) or None
    """
    B, I = x.shape
    H = h.shape[1]
    assert weight_ih.shape == (2 * H, I)
    assert weight_hh.shape == (2 * H, H)
    out_dtype = x.dtype

    if bias is None:
        bias = jnp.zeros((2 * H,), jnp.float32)

    # ---------- wrapper-side glue (pure layout, no extra FLOPs) ----------
    # Split the fused 2H gate dimension per gate and fuse the ih/hh matmuls:
    # per gate   [x | h] @ [W_ih_g^T ; W_hh_g^T]   (K = I + H)
    w_z = jnp.concatenate([weight_ih[:H].T, weight_hh[:H].T], axis=0)  # (I+H, H)
    w_n = jnp.concatenate([weight_ih[H:].T, weight_hh[H:].T], axis=0)  # (I+H, H)
    b_z = bias[:H].reshape(1, H).astype(jnp.float32)
    b_n = bias[H:].reshape(1, H).astype(jnp.float32)

    xh = jnp.concatenate([x, h], axis=1)                               # (B, I+H)
    K = I + H

    # Lane-dense padding: hidden -> multiple of 128, batch -> multiple of the
    # batch tile (itself a multiple of 8). Padded columns/rows are zero and
    # are sliced off after the call.
    Hp = _round_up(H, 128)
    Bp = _round_up(B, 8)
    TB = min(_round_up(block_b, 8), Bp)
    Bp = _round_up(Bp, TB)

    w_z = jnp.pad(w_z, ((0, 0), (0, Hp - H)))
    w_n = jnp.pad(w_n, ((0, 0), (0, Hp - H)))
    b_z = jnp.pad(b_z, ((0, 0), (0, Hp - H)))
    b_n = jnp.pad(b_n, ((0, 0), (0, Hp - H)))
    h_p = jnp.pad(h, ((0, Bp - B), (0, Hp - H)))
    xh = jnp.pad(xh, ((0, Bp - B), (0, 0)))

    if use_bf16_matmul:
        # Halves weight/activation HBM traffic and doubles MXU rate; accumulation
        # stays f32 and the z*h blend keeps h at full precision.
        xh = xh.astype(jnp.bfloat16)
        w_z = w_z.astype(jnp.bfloat16)
        w_n = w_n.astype(jnp.bfloat16)

    nb = Bp // TB

    # ---------- advisory cost + VMEM budget ----------
    flops = 2 * 2 * Bp * K * Hp                      # two matmuls per tile * nb
    transcendentals = Bp * Hp                        # one exp per sigmoid element
    bytes_accessed = int(
        sum(int(a.size) * a.dtype.itemsize for a in (xh, h_p, w_z, w_n, b_z, b_n))
        + Bp * Hp * jnp.dtype(out_dtype).itemsize
    )

    tile_bytes = (TB * K * xh.dtype.itemsize
                  + TB * Hp * h_p.dtype.itemsize
                  + TB * Hp * jnp.dtype(out_dtype).itemsize)
    weight_bytes = sum(int(a.size) * a.dtype.itemsize for a in (w_z, w_n, b_z, b_n))
    # Double-buffered activation tiles + single-buffered resident weights + slack,
    # clamped to [32 MiB, 48 MiB] so it is legal on v5e/v6e (128 MiB) and v7x (64 MiB).
    vmem_limit = int(min(48 * 1024 * 1024,
                         max(32 * 1024 * 1024,
                             2 * tile_bytes + weight_bytes + (4 << 20))))

    out_padded = pl.pallas_call(
        _mgru_kernel,
        out_shape=jax.ShapeDtypeStruct((Bp, Hp), out_dtype),
        grid=(nb,),
        in_specs=[
            pl.BlockSpec((TB, K), lambda b: (b, 0)),    # xh   : batch-tiled
            pl.BlockSpec((TB, Hp), lambda b: (b, 0)),   # h    : batch-tiled
            pl.BlockSpec((K, Hp), lambda b: (0, 0)),    # w_z  : resident
            pl.BlockSpec((K, Hp), lambda b: (0, 0)),    # w_n  : resident
            pl.BlockSpec((1, Hp), lambda b: (0, 0)),    # b_z  : resident
            pl.BlockSpec((1, Hp), lambda b: (0, 0)),    # b_n  : resident
        ],
        out_specs=pl.BlockSpec((TB, Hp), lambda b: (b, 0)),
        compiler_params=pltpu.CompilerParams(
            dimension_semantics=("parallel",),          # megacore sharding on v7x
            vmem_limit_bytes=vmem_limit,
        ),
        cost_estimate=pl.CostEstimate(
            flops=flops,
            transcendentals=transcendentals,
            bytes_accessed=bytes_accessed,
        ),
    )(xh, h_p, w_z, w_n, b_z, b_n)

    return out_padded[:B, :H]

    # TODO(synk): if this cell is driven over a sequence (DeepVO RNN), move the
    # time loop into the grid with a VMEM h-accumulator so weights stay resident
    # across all timesteps (one weight DMA instead of T).


def mgru_cell_ref(x, h, weight_ih, weight_hh, bias):
    """Pure-JAX reference mirroring the PyTorch MGRUCell.forward."""
    H = h.shape[1]
    ih = x @ weight_ih.T + bias
    hh = h @ weight_hh.T
    z = jax.nn.sigmoid(ih[:, :H] + hh[:, :H])
    n = jnp.maximum(ih[:, H:] + hh[:, H:], 0.0)
    return (1.0 - z) * n + z * h


if __name__ == "__main__":
    key = jax.random.PRNGKey(0)
    B, I, H = 4, 16, 32
    stdv = 1.0 / math.sqrt(H)

    ks = jax.random.split(key, 5)
    x = jax.random.normal(ks[0], (B, I), dtype=jnp.float32)
    h = jax.random.normal(ks[1], (B, H), dtype=jnp.float32)
    weight_ih = jax.random.uniform(ks[2], (2 * H, I), jnp.float32, -stdv, stdv)
    weight_hh = jax.random.uniform(ks[3], (2 * H, H), jnp.float32, -stdv, stdv)
    bias = jax.random.uniform(ks[4], (2 * H,), jnp.float32, -stdv, stdv)

    ref = mgru_cell_ref(x, h, weight_ih, weight_hh, bias)

    # f32 path (exact semantics).
    out = jax.block_until_ready(mgru_cell(x, h, weight_ih, weight_hh, bias))
    assert out.shape == (B, H)
    assert jnp.allclose(out, ref, atol=2e-5, rtol=2e-5), "f32 mismatch vs reference"

    # bf16-matmul fast path (bandwidth/MXU optimization), looser tolerance.
    out_bf16 = jax.block_until_ready(
        mgru_cell(x, h, weight_ih, weight_hh, bias, use_bf16_matmul=True))
    assert jnp.allclose(out_bf16, ref, atol=5e-2, rtol=5e-2), "bf16 mismatch vs reference"

    print("KERNEL_OK")
</pallas_src>

<mosaic_0001>
module attributes {stable_mosaic.version = 11 : i64} {
  func.func @_mgru_kernel(%arg0: i32, %arg1: memref<8x48xf32, #tpu.memory_space<vmem>>, %arg2: memref<8x128xf32, #tpu.memory_space<vmem>>, %arg3: memref<48x128xf32, #tpu.memory_space<vmem>>, %arg4: memref<48x128xf32, #tpu.memory_space<vmem>>, %arg5: memref<1x128xf32, #tpu.memory_space<vmem>>, %arg6: memref<1x128xf32, #tpu.memory_space<vmem>>, %arg7: memref<8x128xf32, #tpu.memory_space<vmem>>) attributes {dimension_semantics = [#tpu.dimension_semantics<parallel>], iteration_bounds = array<i64: 1>, scalar_prefetch = 0 : i64, scratch_operands = 0 : i64, tpu.core_type = #tpu.core_type<tc>, window_params = [{transform_indices = @transform_0, window_bounds = array<i64: 8, 48>}, {transform_indices = @transform_1, window_bounds = array<i64: 8, 128>}, {pipeline_mode = #tpu.pipeline_mode<synchronous>, transform_indices = @transform_2, window_bounds = array<i64: 48, 128>}, {pipeline_mode = #tpu.pipeline_mode<synchronous>, transform_indices = @transform_3, window_bounds = array<i64: 48, 128>}, {pipeline_mode = #tpu.pipeline_mode<synchronous>, transform_indices = @transform_4, window_bounds = array<i64: 1, 128>}, {pipeline_mode = #tpu.pipeline_mode<synchronous>, transform_indices = @transform_5, window_bounds = array<i64: 1, 128>}, {transform_indices = @transform_6, window_bounds = array<i64: 8, 128>}]} {
    %c0 = arith.constant 0 : index
    %c0_0 = arith.constant 0 : index
    %0 = vector.load %arg1[%c0, %c0_0] : memref<8x48xf32, #tpu.memory_space<vmem>>, vector<8x48xf32>
    %c0_1 = arith.constant 0 : index
    %c0_2 = arith.constant 0 : index
    %1 = vector.load %arg3[%c0_1, %c0_2] : memref<48x128xf32, #tpu.memory_space<vmem>>, vector<48x128xf32>
    %cst = arith.constant dense<0.000000e+00> : vector<8x128xf32>
    %2 = tpu.matmul %0, %1, %cst {dimension_numbers = #tpu.dot_dimension_numbers<[1], [0], [0], [1], [0, 0, 1, 1], [], []>} : vector<8x48xf32>, vector<48x128xf32>, vector<8x128xf32> -> vector<8x128xf32>
    %c0_3 = arith.constant 0 : index
    %c0_4 = arith.constant 0 : index
    %3 = vector.load %arg5[%c0_3, %c0_4] : memref<1x128xf32, #tpu.memory_space<vmem>>, vector<1x128xf32>
    %4 = vector.broadcast %3 : vector<1x128xf32> to vector<8x128xf32>
    %5 = arith.addf %2, %4 : vector<8x128xf32>
    %6 = arith.negf %5 : vector<8x128xf32>
    %7 = math.exp %6 : vector<8x128xf32>
    %cst_5 = arith.constant 1.000000e+00 : f32
    %8 = vector.broadcast %cst_5 : f32 to vector<8x128xf32>
    %9 = arith.addf %8, %7 : vector<8x128xf32>
    %10 = arith.divf %8, %9 : vector<8x128xf32>
    %c0_6 = arith.constant 0 : index
    %c0_7 = arith.constant 0 : index
    %11 = vector.load %arg4[%c0_6, %c0_7] : memref<48x128xf32, #tpu.memory_space<vmem>>, vector<48x128xf32>
    %cst_8 = arith.constant dense<0.000000e+00> : vector<8x128xf32>
    %12 = tpu.matmul %0, %11, %cst_8 {dimension_numbers = #tpu.dot_dimension_numbers<[1], [0], [0], [1], [0, 0, 1, 1], [], []>} : vector<8x48xf32>, vector<48x128xf32>, vector<8x128xf32> -> vector<8x128xf32>
    %c0_9 = arith.constant 0 : index
    %c0_10 = arith.constant 0 : index
    %13 = vector.load %arg6[%c0_9, %c0_10] : memref<1x128xf32, #tpu.memory_space<vmem>>, vector<1x128xf32>
    %14 = vector.broadcast %13 : vector<1x128xf32> to vector<8x128xf32>
    %15 = arith.addf %12, %14 : vector<8x128xf32>
    %cst_11 = arith.constant 0.000000e+00 : f32
    %16 = vector.broadcast %cst_11 : f32 to vector<8x128xf32>
    %17 = arith.maximumf %15, %16 : vector<8x128xf32>
    %c0_12 = arith.constant 0 : index
    %c0_13 = arith.constant 0 : index
    %18 = vector.load %arg2[%c0_12, %c0_13] : memref<8x128xf32, #tpu.memory_space<vmem>>, vector<8x128xf32>
    %cst_14 = arith.constant 1.000000e+00 : f32
    %19 = vector.broadcast %cst_14 : f32 to vector<8x128xf32>
    %20 = arith.subf %19, %10 : vector<8x128xf32>
    %21 = arith.mulf %20, %17 : vector<8x128xf32>
    %22 = arith.mulf %10, %18 : vector<8x128xf32>
    %23 = arith.addf %21, %22 : vector<8x128xf32>
    %c0_15 = arith.constant 0 : index
    %c0_16 = arith.constant 0 : index
    %24 = vector.load %arg7[%c0_15, %c0_16] : memref<8x128xf32, #tpu.memory_space<vmem>>, vector<8x128xf32>
    tpu.vector_store %arg7[%c0_15, %c0_16], %23 {strides = array<i32>} : memref<8x128xf32, #tpu.memory_space<vmem>>, vector<8x128xf32>,
    return
  }
  func.func @transform_0(%arg0: i32) -> (i32, i32) {
    %c0_i32 = arith.constant 0 : i32
    %c0_i32_0 = arith.constant 0 : i32
    return %arg0, %c0_i32 : i32, i32
  }
  func.func @transform_1(%arg0: i32) -> (i32, i32) {
    %c0_i32 = arith.constant 0 : i32
    %c0_i32_0 = arith.constant 0 : i32
    return %arg0, %c0_i32 : i32, i32
  }
  func.func @transform_2(%arg0: i32) -> (i32, i32) {
    %c0_i32 = arith.constant 0 : i32
    %c0_i32_0 = arith.constant 0 : i32
    %c0_i32_1 = arith.constant 0 : i32
    return %c0_i32, %c0_i32_0 : i32, i32
  }
  func.func @transform_3(%arg0: i32) -> (i32, i32) {
    %c0_i32 = arith.constant 0 : i32
    %c0_i32_0 = arith.constant 0 : i32
    %c0_i32_1 = arith.constant 0 : i32
    return %c0_i32, %c0_i32_0 : i32, i32
  }
  func.func @transform_4(%arg0: i32) -> (i32, i32) {
    %c0_i32 = arith.constant 0 : i32
    %c0_i32_0 = arith.constant 0 : i32
    %c0_i32_1 = arith.constant 0 : i32
    return %c0_i32, %c0_i32_0 : i32, i32
  }
  func.func @transform_5(%arg0: i32) -> (i32, i32) {
    %c0_i32 = arith.constant 0 : i32
    %c0_i32_0 = arith.constant 0 : i32
    %c0_i32_1 = arith.constant 0 : i32
    return %c0_i32, %c0_i32_0 : i32, i32
  }
  func.func @transform_6(%arg0: i32) -> (i32, i32) {
    %c0_i32 = arith.constant 0 : i32
    %c0_i32_0 = arith.constant 0 : i32
    return %arg0, %c0_i32 : i32, i32
  }
}

</mosaic_0001>

<llo_original>
// kernel: tpu_custom_call.1
$region0: #{tpu_custom_call.1}
  #allocation0 [shape = 'u32[]', space=smem, size = 0x4, offset = 0x4, fixed_abs, tag = 'smem constant byte address 0x4 - core index']
  #allocation1 [shape = 'u32[144,128]{1,0:T(1,128)}', space=vmem, size = 0x12000, scoped, tag = 'internal scratch']
  %s0 = inlined_call_operand.hbm [shape: f32[8,48], index: 0, kind: input, shape index: {}]
  %s1 = inlined_call_operand.hbm [shape: f32[8,128], index: 1, kind: input, shape index: {}]
  %s2 = inlined_call_operand.hbm [shape: f32[48,128], index: 2, kind: input, shape index: {}]
  %s3 = inlined_call_operand.hbm [shape: f32[48,128], index: 3, kind: input, shape index: {}]
  %s4 = inlined_call_operand.vmem [shape: f32[1,128], index: 4, kind: input, shape index: {}]
  %s5 = inlined_call_operand.vmem [shape: f32[1,128], index: 5, kind: input, shape index: {}]
  %s6 = inlined_call_operand.hbm [shape: f32[8,128], index: 6, kind: output, shape index: {}]
  %s7 = sld [smem:[#allocation0]]
  $region50: #{tpu_custom_call.1} parent=0
    _
  %s9 = ssub.s32 1, %s7
  %s10 = scalar_select 0, %s9, %s7
  $region1: #{tpu_custom_call.1} parent=0
    #allocation2 [shape = 'u8[4096]{0}', space=vmem, size = 0x1000, scoped, tag = 'input window, operand 0, single buffered']
    #allocation3 [shape = 's32[1]{0}', space=sflag, size = 0x4, scoped, tag = 'scoped memory for tpu_custom_call.1']
    #allocation4 [shape = 's32[1]{0}', space=sflag, size = 0x4, scoped, tag = 'scoped memory for tpu_custom_call.1']
    #allocation5 [shape = 'u8[4096]{0}', space=vmem, size = 0x1000, scoped, tag = 'input window, operand 1, single buffered']
    #allocation6 [shape = 's32[1]{0}', space=sflag, size = 0x4, scoped, tag = 'scoped memory for tpu_custom_call.1']
    #allocation7 [shape = 'u8[24576]{0}', space=vmem, size = 0x6000, scoped, tag = 'input window, operand 2, single buffered']
    #allocation8 [shape = 'u8[24576]{0}', space=vmem, size = 0x6000, scoped, tag = 'input window, operand 3, single buffered']
    #allocation9 [shape = 's32[1]{0}', space=sflag, size = 0x4, scoped, tag = 'scoped memory for tpu_custom_call.1']
    #allocation10 [shape = 'u8[4096]{0}', space=vmem, size = 0x1000, scoped, tag = 'output window, operand 0, single buffered']
    %11 = vsyncpa [#allocation3], 0
    %12 = vsyncpa [#allocation6], 0
    %13 = vsyncpa [#allocation9], 0
    %14 = vsyncpa [#allocation4], 0
    // Predicated region
    $region2: #{tpu_custom_call.1} parent=1 // pred_check
      _
    $region3: #{tpu_custom_call.1} parent=1 // pred_check_branch
      %16 = sbr.rel (0) target = $region5
    $region4: #{tpu_custom_call.1} parent=1 // pred_region
      %s18 = ssub.s32 128, 128
      %19 = vsyncadd [#allocation3], %s18
      %s21 = sshll.u32 [#allocation2], 4
      %s22 = int_to_ptr.vmem [resolvable:$true] %s21
      %24 = dma.hbm_to_vmem [thread:$0]  %s0, 128, %s22, [#allocation3]
    $region5: #{tpu_custom_call.1} parent=1 // pred_fallthru
      _
    // Predicated region
    $region6: #{tpu_custom_call.1} parent=1 // pred_check
      _
    $region7: #{tpu_custom_call.1} parent=1 // pred_check_branch
      %26 = sbr.rel (0) target = $region9
    $region8: #{tpu_custom_call.1} parent=1 // pred_region
      %s28 = ssub.s32 128, 128
      %29 = vsyncadd [#allocation6], %s28
      %s31 = sshll.u32 [#allocation5], 4
      %s32 = int_to_ptr.vmem [resolvable:$true] %s31
      %34 = dma.hbm_to_vmem [thread:$0]  %s1, 128, %s32, [#allocation6]
    $region9: #{tpu_custom_call.1} parent=1 // pred_fallthru
      _
    // Predicated region
    $region10: #{tpu_custom_call.1} parent=1 // pred_check
      _
    $region11: #{tpu_custom_call.1} parent=1 // pred_check_branch
      %36 = sbr.rel (0) target = $region13
    $region12: #{tpu_custom_call.1} parent=1 // pred_region
      %s38 = ssub.s32 768, 768
      %39 = vsyncadd [#allocation6], %s38
      %s40 = sshll.u32 [#allocation7], 4
      %s41 = int_to_ptr.vmem [resolvable:$true] %s40
      %46 = dma.hbm_to_vmem [thread:$0]  %s2, 768, %s41, [#allocation6], 128, 128, 8
    $region13: #{tpu_custom_call.1} parent=1 // pred_fallthru
      _
    // Predicated region
    $region14: #{tpu_custom_call.1} parent=1 // pred_check
      _
    $region15: #{tpu_custom_call.1} parent=1 // pred_check_branch
      %48 = sbr.rel (0) target = $region17
    $region16: #{tpu_custom_call.1} parent=1 // pred_region
      %s50 = ssub.s32 768, 768
      %51 = vsyncadd [#allocation9], %s50
      %s52 = sshll.u32 [#allocation8], 4
      %s53 = int_to_ptr.vmem [resolvable:$true] %s52
      %58 = dma.hbm_to_vmem [thread:$0]  %s3, 768, %s53, [#allocation9], 128, 128, 8
    $region17: #{tpu_custom_call.1} parent=1 // pred_fallthru
      _
    // Predicated region
    $region18: #{tpu_custom_call.1} parent=1 // pred_check
      _
    $region19: #{tpu_custom_call.1} parent=1 // pred_check_branch
      %60 = sbr.rel (0) target = $region21
    $region20: #{tpu_custom_call.1} parent=1 // pred_region
      _
    $region21: #{tpu_custom_call.1} parent=1 // pred_fallthru
      _
    // Predicated region
    $region22: #{tpu_custom_call.1} parent=1 // pred_check
      _
    $region23: #{tpu_custom_call.1} parent=1 // pred_check_branch
      %62 = sbr.rel (0) target = $region25
    $region24: #{tpu_custom_call.1} parent=1 // pred_region
      _
    $region25: #{tpu_custom_call.1} parent=1 // pred_fallthru
      _
    // Predicated region
    $region26: #{tpu_custom_call.1} parent=1 // pred_check
      _
    $region27: #{tpu_custom_call.1} parent=1 // pred_check_branch
      %64 = sbr.rel (0) target = $region29
    $region28: #{tpu_custom_call.1} parent=1 // pred_region
      %65 = dma.done [#allocation3], 128
    $region29: #{tpu_custom_call.1} parent=1 // pred_fallthru
      _
    // Predicated region
    $region30: #{tpu_custom_call.1} parent=1 // pred_check
      _
    $region31: #{tpu_custom_call.1} parent=1 // pred_check_branch
      %67 = sbr.rel (0) target = $region33
    $region32: #{tpu_custom_call.1} parent=1 // pred_region
      %68 = dma.done [#allocation6], 128
    $region33: #{tpu_custom_call.1} parent=1 // pred_fallthru
      _
    // Predicated region
    $region34: #{tpu_custom_call.1} parent=1 // pred_check
      _
    $region35: #{tpu_custom_call.1} parent=1 // pred_check_branch
      %70 = sbr.rel (0) target = $region37
    $region36: #{tpu_custom_call.1} parent=1 // pred_region
      %71 = dma.done [#allocation6], 768
    $region37: #{tpu_custom_call.1} parent=1 // pred_fallthru
      _
    // Predicated region
    $region38: #{tpu_custom_call.1} parent=1 // pred_check
      _
    $region39: #{tpu_custom_call.1} parent=1 // pred_check_branch
      %73 = sbr.rel (0) target = $region41
    $region40: #{tpu_custom_call.1} parent=1 // pred_region
      %74 = dma.done [#allocation9], 768
    $region41: #{tpu_custom_call.1} parent=1 // pred_fallthru
      _
    %v75 = vld [vmem:[#allocation2] sm:$0xff]
    %v76 = vld [vmem:[#allocation7] sm:$0xff]
    %v77 = vld [vmem:[#allocation7 + $0x8] sm:$0xff]
    %v78 = vld [vmem:[#allocation7 + $0x10] sm:$0xff]
    %v79 = vld [vmem:[#allocation7 + $0x18] sm:$0xff]
    %v80 = vld [vmem:[#allocation7 + $0x20] sm:$0xff]
    %v81 = vld [vmem:[#allocation7 + $0x28] sm:$0xff]
    %v82 = vld [vmem:[%s4] sm:$0x1]
    %v84 = vlaneseq
    %v85 = vshrl.u32 %v84, 7
    %v86 = vsub.s32 0, %v85
    %v87 = vrot.slane %v82, %v86
    %vm89 = vcmask 392192
    %v91 = vsel %vm89, %v75, 0
    %93 = vmatprep.subr.mxu0 0.0
    %94 = vmatpush1.msra.mxu0 %v76
    %95 = vmatprep.subr.mxu0 0.0
    %96 = vmatpush1.msra.mxu0 %v77
    %97 = vmatprep.subr.mxu0 0.0
    %98 = vmatpush1.msra.mxu0 %v78
    %99 = vmatprep.subr.mxu0 0.0
    %100 = vmatpush1.msra.mxu0 %v79
    %101 = vmatprep.subr.mxu0 0.0
    %102 = vmatpush1.msra.mxu0 %v80
    %103 = vmatprep.subr.mxu0 0.0
    %104 = vmatpush1.msra.mxu0 %v81
    %105 = vmatprep.subr.mxu0 0.0
    %106 = vmatpush1.msra.mxu0 0.0
    %107 = vmatprep.subr.mxu0 0.0
    %108 = vmatpush1.msra.mxu0 0.0
    %109 = vmatprep.subr.mxu0 0.0
    %110 = vmatpush1.msra.mxu0 0.0
    %111 = vmatprep.subr.mxu0 0.0
    %112 = vmatpush1.msra.mxu0 0.0
    %113 = vmatprep.subr.mxu0 0.0
    %114 = vmatpush1.msra.mxu0 0.0
    %115 = vmatprep.subr.mxu0 0.0
    %116 = vmatpush1.msra.mxu0 0.0
    %117 = vmatprep.subr.mxu0 0.0
    %118 = vmatpush1.msra.mxu0 0.0
    %119 = vmatprep.subr.mxu0 0.0
    %120 = vmatpush1.msra.mxu0 0.0
    %121 = vmatprep.subr.mxu0 0.0
    %122 = vmatpush1.msra.mxu0 0.0
    %123 = vmatprep.subr.mxu0 0.0
    %124 = vmatpush1.msra.mxu0 0.0
    %125 = vmatprep.subr.mxu0 0.0
    %126 = vmatpush1.msra.mxu0 0.0
    %127 = vmatprep.subr.mxu0 0.0
    %128 = vmatpush1.msra.mxu0 0.0
    %129 = vmatprep.subr.mxu0 0.0
    %130 = vmatpush1.msra.mxu0 0.0
    %131 = vmatprep.subr.mxu0 0.0
    %132 = vmatpush1.msra.mxu0 0.0
    %133 = vmatprep.subr.mxu0 0.0
    %134 = vmatpush1.msra.mxu0 0.0
    %135 = vmatprep.subr.mxu0 0.0
    %136 = vmatpush1.msra.mxu0 0.0
    %137 = vmatprep.subr.mxu0 0.0
    %138 = vmatpush1.msra.mxu0 0.0
    %139 = vmatprep.subr.mxu0 0.0
    %140 = vmatpush1.msra.mxu0 0.0
    %141 = vmatprep.subr.mxu0 0.0
    %142 = vmatpush1.msra.mxu0 0.0
    %143 = vmatprep.subr.mxu0 0.0
    %144 = vmatpush1.msra.mxu0 0.0
    %145 = vmatprep.subr.mxu0 0.0
    %146 = vmatpush1.msra.mxu0 0.0
    %147 = vmatprep.subr.mxu0 0.0
    %148 = vmatpush1.msra.mxu0 0.0
    %149 = vmatprep.subr.mxu0 0.0
    %150 = vmatpush1.msra.mxu0 0.0
    %151 = vmatprep.subr.mxu0 0.0
    %152 = vmatpush1.msra.mxu0 0.0
    %153 = vmatprep.subr.mxu0 0.0
    %154 = vmatpush1.msra.mxu0 0.0
    %155 = vmatprep.subr.mxu0 0.0
    %156 = vmatpush1.msra.mxu0 0.0
    %157 = vmatprep.mubr.f32.mxu0 0.0
    %158 = vmatmul.mubr.f32.gmra.mrb[0].mxu0 %v91
    %v159 = vpop.f32.mrb[0].mxu0
    %v160 = vadd.f32 %v87, %v159
    %v161 = vpop.f32.mrb[0].mxu0
    %162 = vdwg.mxu0
    %v163 = vxor.u32 %v160, 2147483648
    %v164 = vmul.f32 %v163, 1.442695
    %v165 = vpow.pop %v164
    %v166 = vadd.f32 %v165, 1.0
    %v167 = vrcp.pop %v166
    %v168 = vmul.f32 1.0, %v167
    %v169 = vld [vmem:[#allocation8] sm:$0xff]
    %v170 = vld [vmem:[#allocation8 + $0x8] sm:$0xff]
    %v171 = vld [vmem:[#allocation8 + $0x10] sm:$0xff]
    %v172 = vld [vmem:[#allocation8 + $0x18] sm:$0xff]
    %v173 = vld [vmem:[#allocation8 + $0x20] sm:$0xff]
    %v174 = vld [vmem:[#allocation8 + $0x28] sm:$0xff]
    %v175 = vld [vmem:[%s5] sm:$0x1]
    %v177 = vlaneseq
    %v178 = vshrl.u32 %v177, 7
    %v179 = vsub.s32 0, %v178
    %v180 = vrot.slane %v175, %v179
    %182 = vmatprep.subr.mxu0 0.0
    %183 = vmatpush1.msra.mxu0 %v169
    %184 = vmatprep.subr.mxu0 0.0
    %185 = vmatpush1.msra.mxu0 %v170
    %186 = vmatprep.subr.mxu0 0.0
    %187 = vmatpush1.msra.mxu0 %v171
    %188 = vmatprep.subr.mxu0 0.0
    %189 = vmatpush1.msra.mxu0 %v172
    %190 = vmatprep.subr.mxu0 0.0
    %191 = vmatpush1.msra.mxu0 %v173
    %192 = vmatprep.subr.mxu0 0.0
    %193 = vmatpush1.msra.mxu0 %v174
    %194 = vmatprep.subr.mxu0 0.0
    %195 = vmatpush1.msra.mxu0 0.0
    %196 = vmatprep.subr.mxu0 0.0
    %197 = vmatpush1.msra.mxu0 0.0
    %198 = vmatprep.subr.mxu0 0.0
    %199 = vmatpush1.msra.mxu0 0.0
    %200 = vmatprep.subr.mxu0 0.0
    %201 = vmatpush1.msra.mxu0 0.0
    %202 = vmatprep.subr.mxu0 0.0
    %203 = vmatpush1.msra.mxu0 0.0
    %204 = vmatprep.subr.mxu0 0.0
    %205 = vmatpush1.msra.mxu0 0.0
    %206 = vmatprep.subr.mxu0 0.0
    %207 = vmatpush1.msra.mxu0 0.0
    %208 = vmatprep.subr.mxu0 0.0
    %209 = vmatpush1.msra.mxu0 0.0
    %210 = vmatprep.subr.mxu0 0.0
    %211 = vmatpush1.msra.mxu0 0.0
    %212 = vmatprep.subr.mxu0 0.0
    %213 = vmatpush1.msra.mxu0 0.0
    %214 = vmatprep.subr.mxu0 0.0
    %215 = vmatpush1.msra.mxu0 0.0
    %216 = vmatprep.subr.mxu0 0.0
    %217 = vmatpush1.msra.mxu0 0.0
    %218 = vmatprep.subr.mxu0 0.0
    %219 = vmatpush1.msra.mxu0 0.0
    %220 = vmatprep.subr.mxu0 0.0
    %221 = vmatpush1.msra.mxu0 0.0
    %222 = vmatprep.subr.mxu0 0.0
    %223 = vmatpush1.msra.mxu0 0.0
    %224 = vmatprep.subr.mxu0 0.0
    %225 = vmatpush1.msra.mxu0 0.0
    %226 = vmatprep.subr.mxu0 0.0
    %227 = vmatpush1.msra.mxu0 0.0
    %228 = vmatprep.subr.mxu0 0.0
    %229 = vmatpush1.msra.mxu0 0.0
    %230 = vmatprep.subr.mxu0 0.0
    %231 = vmatpush1.msra.mxu0 0.0
    %232 = vmatprep.subr.mxu0 0.0
    %233 = vmatpush1.msra.mxu0 0.0
    %234 = vmatprep.subr.mxu0 0.0
    %235 = vmatpush1.msra.mxu0 0.0
    %236 = vmatprep.subr.mxu0 0.0
    %237 = vmatpush1.msra.mxu0 0.0
    %238 = vmatprep.subr.mxu0 0.0
    %239 = vmatpush1.msra.mxu0 0.0
    %240 = vmatprep.subr.mxu0 0.0
    %241 = vmatpush1.msra.mxu0 0.0
    %242 = vmatprep.subr.mxu0 0.0
    %243 = vmatpush1.msra.mxu0 0.0
    %244 = vmatprep.subr.mxu0 0.0
    %245 = vmatpush1.msra.mxu0 0.0
    %246 = vmatprep.mubr.f32.mxu0 0.0
    %247 = vmatmul.mubr.f32.gmra.mrb[0].mxu0 %v91
    %v248 = vpop.f32.mrb[0].mxu0
    %v249 = vadd.f32 %v180, %v248
    %v250 = vpop.f32.mrb[0].mxu0
    %251 = vdwg.mxu0
    %v252 = vmax.f32 %v249, 0.0
    %v253 = vld [vmem:[#allocation5] sm:$0xff]
    %v254 = vsub.f32 1.0, %v168
    %v255 = vmul.f32 %v254, %v252
    %v256 = vmul.f32 %v168, %v253
    %v257 = vadd.f32 %v255, %v256
    %258 = vst [vmem:[#allocation10] sm:$0xff] %v257
    // Predicated region
    $region42: #{tpu_custom_call.1} parent=1 // pred_check
      _
    $region43: #{tpu_custom_call.1} parent=1 // pred_check_branch
      %260 = sbr.rel (0) target = $region45
    $region44: #{tpu_custom_call.1} parent=1 // pred_region
      %s262 = ssub.s32 128, 128
      %263 = vsyncadd [#allocation4], %s262
      %s265 = sshll.u32 [#allocation10], 4
      %s266 = int_to_ptr.vmem [resolvable:$true] %s265
      %268 = dma.vmem_to_hbm [thread:$0]  %s266, 128, %s6, [#allocation4]
    $region45: #{tpu_custom_call.1} parent=1 // pred_fallthru
      _
    // Predicated region
    $region46: #{tpu_custom_call.1} parent=1 // pred_check
      _
    $region47: #{tpu_custom_call.1} parent=1 // pred_check_branch
      %270 = sbr.rel (0) target = $region49
    $region48: #{tpu_custom_call.1} parent=1 // pred_region
      %271 = dma.done [#allocation4], 128
    $region49: #{tpu_custom_call.1} parent=1 // pred_fallthru
      _
    %272 = vsyncpa [#allocation3], 1
    %273 = vsyncpa [#allocation6], 1
    %274 = vsyncpa [#allocation9], 1
    %275 = vsyncpa [#allocation4], 1

</llo_original>
